<compile_context>
chip_gen: v6e
topology: v6e:2x2x1
jax: 0.10.0
libtpu: 0.0.40
codegen_flags: <defaults>
</compile_context>

<pallas_src>
import math

import jax
import jax.numpy as jnp
from jax.experimental import pallas as pl
from jax.experimental.pallas import tpu as pltpu


def _gcn_kernel(adj_ref, x_ref, w_ref, b_ref, out_ref, acc_ref):
    k = pl.program_id(1)

    @pl.when(k == 0)
    def _():
        acc_ref[...] = jnp.zeros_like(acc_ref)

    # support tile for this contraction slice: (TK, Fin) @ (Fin, Fout) on MXU.
    support = jnp.dot(x_ref[...], w_ref[...], preferred_element_type=jnp.float32)
    # accumulate adj tile @ support tile: (TM, TK) @ (TK, Fout) on MXU.
    acc_ref[...] += jnp.dot(adj_ref[...], support, preferred_element_type=jnp.float32)

    @pl.when(k == pl.num_programs(1) - 1)
    def _():
        out_ref[...] = (acc_ref[...] + b_ref[...]).astype(out_ref.dtype)


def _round_up(x, m):
    return (x + m - 1) // m * m


def graph_convolution(inputs, adj, weight, bias=None, global_W=None, *,
                      tm=256, tk=256):
    """Dense GraphConvolution forward: adj @ (inputs @ weight [@ global_W]) + bias.

    inputs: (N, Fin); adj: (N, N); weight: (Fin, Fout); bias: (Fout,) or None.
    """
    N, Fin = inputs.shape

    # Algebraic fold: (x @ W) @ global_W == x @ (W @ global_W).
    w_eff = weight if global_W is None else jnp.dot(weight, global_W)
    Fout = w_eff.shape[1]
    b = (jnp.zeros((1, Fout), inputs.dtype) if bias is None
         else bias.reshape(1, Fout).astype(inputs.dtype))

    # Tile sizes: keep feature dims whole (they sit on lanes); tile rows and
    # the contraction axis. Defaults keep double-buffered blocks far below the
    # 32 MiB scoped / 64 MiB (v7x) VMEM budgets.
    tm = min(tm, _round_up(N, 8))
    tk = min(tk, _round_up(N, 128))
    n_rows = _round_up(N, tm)
    n_ctr = _round_up(N, tk)

    adj_p = adj
    x_p = inputs
    if (n_rows, n_ctr) != (N, N):
        adj_p = jnp.zeros((n_rows, n_ctr), adj.dtype).at[:N, :N].set(adj)
    if n_ctr != N:
        x_p = jnp.zeros((n_ctr, Fin), inputs.dtype).at[:N, :].set(inputs)

    grid = (n_rows // tm, n_ctr // tk)

    flops = 2.0 * n_rows * n_ctr * Fout + 2.0 * grid[0] * n_ctr * Fin * Fout
    bytes_accessed = 4.0 * (n_rows * n_ctr + grid[0] * n_ctr * Fin
                            + Fin * Fout + n_rows * Fout)
    cost = pl.CostEstimate(flops=int(flops), transcendentals=0,
                           bytes_accessed=int(bytes_accessed))

    out_p = pl.pallas_call(
        _gcn_kernel,
        out_shape=jax.ShapeDtypeStruct((n_rows, Fout), inputs.dtype),
        grid_spec=pltpu.PrefetchScalarGridSpec(
            num_scalar_prefetch=0,
            grid=grid,
            in_specs=[
                pl.BlockSpec((tm, tk), lambda i, k: (i, k)),       # adj tile
                pl.BlockSpec((tk, Fin), lambda i, k: (k, 0)),      # inputs tile
                pl.BlockSpec((Fin, Fout), lambda i, k: (0, 0)),    # weight (resident)
                pl.BlockSpec((1, Fout), lambda i, k: (0, 0)),      # bias (resident)
            ],
            out_specs=pl.BlockSpec((tm, Fout), lambda i, k: (i, 0)),
            scratch_shapes=[pltpu.VMEM((tm, Fout), jnp.float32)],
        ),
        compiler_params=pltpu.CompilerParams(
            dimension_semantics=("parallel", "arbitrary")),
        cost_estimate=cost,
    )(adj_p, x_p, w_eff, b)

    return out_p[:N, :]


if __name__ == "__main__":
    N, Fin, Fout = 512, 128, 128

    key = jax.random.PRNGKey(0)
    k_x, k_a, k_w, k_b = jax.random.split(key, 4)

    inputs = jax.random.normal(k_x, (N, Fin), dtype=jnp.float32)

    # Random symmetric, row-normalized adjacency (dense stand-in for the
    # torch.sparse adj).
    a_raw = (jax.random.uniform(k_a, (N, N)) < 0.05).astype(jnp.float32)
    adj = jnp.maximum(a_raw, a_raw.T) + jnp.eye(N, dtype=jnp.float32)
    adj = adj / jnp.sum(adj, axis=1, keepdims=True)

    # Parameter init exactly as GraphConvolution.reset_parameters().
    stdv = 1.0 / math.sqrt(Fout)  # weight.size(1) == out_features
    weight = jax.random.uniform(k_w, (Fin, Fout), jnp.float32, -stdv, stdv)
    bias = jax.random.uniform(k_b, (Fout,), jnp.float32, -stdv, stdv)

    out = graph_convolution(inputs, adj, weight, bias)
    jax.block_until_ready(out)

    # Pure-JAX reference mirroring the PyTorch forward (dense spmm).
    ref = jnp.dot(adj,
                  jnp.dot(inputs, weight, precision=jax.lax.Precision.HIGHEST),
                  precision=jax.lax.Precision.HIGHEST) + bias

    assert out.shape == (N, Fout)
    assert jnp.allclose(out, ref, atol=1e-3, rtol=1e-3), \
        float(jnp.max(jnp.abs(out - ref)))

    print("KERNEL_OK")
</pallas_src>

<mosaic_0001>
module attributes {stable_mosaic.version = 11 : i64} {
  func.func @_gcn_kernel(%arg0: i32, %arg1: i32, %arg2: memref<256x256xf32, #tpu.memory_space<vmem>>, %arg3: memref<256x128xf32, #tpu.memory_space<vmem>>, %arg4: memref<128x128xf32, #tpu.memory_space<vmem>>, %arg5: memref<1x128xf32, #tpu.memory_space<vmem>>, %arg6: memref<256x128xf32, #tpu.memory_space<vmem>>, %arg7: memref<256x128xf32, #tpu.memory_space<vmem>>) attributes {dimension_semantics = [#tpu.dimension_semantics<parallel>, #tpu.dimension_semantics<arbitrary>], iteration_bounds = array<i64: 2, 2>, scalar_prefetch = 0 : i64, scratch_operands = 1 : i64, tpu.core_type = #tpu.core_type<tc>, window_params = [{transform_indices = @transform_0, window_bounds = array<i64: 256, 256>}, {transform_indices = @transform_1, window_bounds = array<i64: 256, 128>}, {pipeline_mode = #tpu.pipeline_mode<synchronous>, transform_indices = @transform_2, window_bounds = array<i64: 128, 128>}, {pipeline_mode = #tpu.pipeline_mode<synchronous>, transform_indices = @transform_3, window_bounds = array<i64: 1, 128>}, {transform_indices = @transform_4, window_bounds = array<i64: 256, 128>}]} {
    %c0_i32 = arith.constant 0 : i32
    %0 = arith.cmpi eq, %arg1, %c0_i32 : i32
    %1 = arith.extui %0 : i1 to i32
    %c0_i32_0 = arith.constant 0 : i32
    %2 = arith.cmpi ne, %1, %c0_i32_0 : i32
    scf.if %2 {
      %cst_12 = arith.constant 0.000000e+00 : f32
      %14 = vector.broadcast %cst_12 : f32 to vector<256x128xf32>
      %c0_13 = arith.constant 0 : index
      %c0_14 = arith.constant 0 : index
      %15 = vector.load %arg7[%c0_13, %c0_14] : memref<256x128xf32, #tpu.memory_space<vmem>>, vector<256x128xf32>
      tpu.vector_store %arg7[%c0_13, %c0_14], %14 {strides = array<i32>} : memref<256x128xf32, #tpu.memory_space<vmem>>, vector<256x128xf32>,
    } else {
    }
    %c0 = arith.constant 0 : index
    %c0_1 = arith.constant 0 : index
    %3 = vector.load %arg3[%c0, %c0_1] : memref<256x128xf32, #tpu.memory_space<vmem>>, vector<256x128xf32>
    %c0_2 = arith.constant 0 : index
    %c0_3 = arith.constant 0 : index
    %4 = vector.load %arg4[%c0_2, %c0_3] : memref<128x128xf32, #tpu.memory_space<vmem>>, vector<128x128xf32>
    %cst = arith.constant dense<0.000000e+00> : vector<256x128xf32>
    %5 = tpu.matmul %3, %4, %cst {dimension_numbers = #tpu.dot_dimension_numbers<[1], [0], [0], [1], [0, 0, 1, 1], [], []>} : vector<256x128xf32>, vector<128x128xf32>, vector<256x128xf32> -> vector<256x128xf32>
    %c0_4 = arith.constant 0 : index
    %c0_5 = arith.constant 0 : index
    %6 = vector.load %arg7[%c0_4, %c0_5] : memref<256x128xf32, #tpu.memory_space<vmem>>, vector<256x128xf32>
    %c0_6 = arith.constant 0 : index
    %c0_7 = arith.constant 0 : index
    %7 = vector.load %arg2[%c0_6, %c0_7] : memref<256x256xf32, #tpu.memory_space<vmem>>, vector<256x256xf32>
    %cst_8 = arith.constant dense<0.000000e+00> : vector<256x128xf32>
    %8 = tpu.matmul %7, %5, %cst_8 {dimension_numbers = #tpu.dot_dimension_numbers<[1], [0], [0], [1], [0, 0, 1, 1], [], []>} : vector<256x256xf32>, vector<256x128xf32>, vector<256x128xf32> -> vector<256x128xf32>
    %9 = arith.addf %6, %8 : vector<256x128xf32>
    %c0_9 = arith.constant 0 : index
    %c0_10 = arith.constant 0 : index
    %10 = vector.load %arg7[%c0_9, %c0_10] : memref<256x128xf32, #tpu.memory_space<vmem>>, vector<256x128xf32>
    tpu.vector_store %arg7[%c0_9, %c0_10], %9 {strides = array<i32>} : memref<256x128xf32, #tpu.memory_space<vmem>>, vector<256x128xf32>,
    %c1_i32 = arith.constant 1 : i32
    %11 = arith.cmpi eq, %arg1, %c1_i32 : i32
    %12 = arith.extui %11 : i1 to i32
    %c0_i32_11 = arith.constant 0 : i32
    %13 = arith.cmpi ne, %12, %c0_i32_11 : i32
    scf.if %13 {
      %c0_12 = arith.constant 0 : index
      %c0_13 = arith.constant 0 : index
      %14 = vector.load %arg7[%c0_12, %c0_13] : memref<256x128xf32, #tpu.memory_space<vmem>>, vector<256x128xf32>
      %c0_14 = arith.constant 0 : index
      %c0_15 = arith.constant 0 : index
      %15 = vector.load %arg5[%c0_14, %c0_15] : memref<1x128xf32, #tpu.memory_space<vmem>>, vector<1x128xf32>
      %16 = vector.broadcast %15 : vector<1x128xf32> to vector<256x128xf32>
      %17 = arith.addf %14, %16 : vector<256x128xf32>
      %c0_16 = arith.constant 0 : index
      %c0_17 = arith.constant 0 : index
      %18 = vector.load %arg6[%c0_16, %c0_17] : memref<256x128xf32, #tpu.memory_space<vmem>>, vector<256x128xf32>
      tpu.vector_store %arg6[%c0_16, %c0_17], %17 {strides = array<i32>} : memref<256x128xf32, #tpu.memory_space<vmem>>, vector<256x128xf32>,
    } else {
    }
    return
  }
  func.func @transform_0(%arg0: i32, %arg1: i32) -> (i32, i32) {
    %c0_i32 = arith.constant 0 : i32
    return %arg0, %arg1 : i32, i32
  }
  func.func @transform_1(%arg0: i32, %arg1: i32) -> (i32, i32) {
    %c0_i32 = arith.constant 0 : i32
    %c0_i32_0 = arith.constant 0 : i32
    return %arg1, %c0_i32 : i32, i32
  }
  func.func @transform_2(%arg0: i32, %arg1: i32) -> (i32, i32) {
    %c0_i32 = arith.constant 0 : i32
    %c0_i32_0 = arith.constant 0 : i32
    %c0_i32_1 = arith.constant 0 : i32
    return %c0_i32, %c0_i32_0 : i32, i32
  }
  func.func @transform_3(%arg0: i32, %arg1: i32) -> (i32, i32) {
    %c0_i32 = arith.constant 0 : i32
    %c0_i32_0 = arith.constant 0 : i32
    %c0_i32_1 = arith.constant 0 : i32
    return %c0_i32, %c0_i32_0 : i32, i32
  }
  func.func @transform_4(%arg0: i32, %arg1: i32) -> (i32, i32) {
    %c0_i32 = arith.constant 0 : i32
    %c0_i32_0 = arith.constant 0 : i32
    return %arg0, %c0_i32 : i32, i32
  }
}

</mosaic_0001>

<llo_original>
// kernel: tpu_custom_call.1
$region0: #{tpu_custom_call.1}
  #allocation0 [shape = 'u32[]', space=smem, size = 0x4, offset = 0x4, fixed_abs, tag = 'smem constant byte address 0x4 - core index']
  #allocation1 [shape = 'u32[144,128]{1,0:T(1,128)}', space=vmem, size = 0x12000, scoped, tag = 'internal scratch']
  #allocation2 [shape = 'f32[256,128]{1,0:T(8,128)}', space=vmem, size = 0x20000, scoped, tag = 'scratch operand']
  %s0 = inlined_call_operand.hbm [shape: f32[512,512], index: 0, kind: input, shape index: {}]
  %s1 = inlined_call_operand.hbm [shape: f32[512,128], index: 1, kind: input, shape index: {}]
  %s2 = inlined_call_operand.hbm [shape: f32[128,128], index: 2, kind: input, shape index: {}]
  %s3 = inlined_call_operand.vmem [shape: f32[1,128], index: 3, kind: input, shape index: {}]
  %s4 = inlined_call_operand.hbm [shape: f32[512,128], index: 4, kind: output, shape index: {}]
  %s5 = sld [smem:[#allocation0]]
  $region69: #{tpu_custom_call.1} parent=0
    _
  %s7 = ssub.s32 1, %s5
  %s8 = scalar_select 0, %s7, %s5
  $region1: #{tpu_custom_call.1} parent=0
    #allocation3 [shape = 'u8[524288]{0}', space=vmem, size = 0x80000, scoped, tag = 'input window, operand 0']
    #allocation4 [shape = 's32[2]{0}', space=sflag, size = 0x8, scoped, tag = 'scoped memory for tpu_custom_call.1']
    #allocation5 [shape = 's32[2]{0}', space=sflag, size = 0x8, scoped, tag = 'scoped memory for tpu_custom_call.1']
    #allocation6 [shape = 'u8[262144]{0}', space=vmem, size = 0x40000, scoped, tag = 'input window, operand 1']
    #allocation7 [shape = 's32[2]{0}', space=sflag, size = 0x8, scoped, tag = 'scoped memory for tpu_custom_call.1']
    #allocation8 [shape = 'u8[65536]{0}', space=vmem, size = 0x10000, scoped, tag = 'input window, operand 2, single buffered']
    #allocation9 [shape = 'u8[262144]{0}', space=vmem, size = 0x40000, scoped, tag = 'output window, operand 0']
    %9 = vsyncpa [#allocation4], 0
    %s10 = scalar_lea.sflag [#allocation4], 1
    %11 = vsyncpa %s10, 0
    %12 = vsyncpa [#allocation7], 0
    %s13 = scalar_lea.sflag [#allocation7], 1
    %14 = vsyncpa %s13, 0
    %15 = vsyncpa [#allocation5], 0
    %s16 = scalar_lea.sflag [#allocation5], 1
    %17 = vsyncpa %s16, 0
    loop: start=0, step=1, limit=6
    $region2: #{tpu_custom_call.1} parent=1 // loop_pre_header
      _
    $region3: #{tpu_custom_call.1} parent=1 // loop_header
      %s19 = sphi 0, %s23
      %p20 = scmp.ge.s32.totalorder %s19, 6
      %s26 = sphi 0, %s38
      %s27 = sphi 0, %s34
      %s28 = sphi 0, %s26
      %s29 = sphi 0, %s27
      %s30 = sphi 0, %s28
      %s31 = sphi 0, %s29
      %s43 = sphi 0, %s45
      %s46 = sphi 0, %s43
      %s47 = sphi 0, %s46
      %s63 = sphi 0, %s47
      %s69 = sphi 0, %s71
      %s72 = sphi 0, %s69
      %s73 = sphi 0, %s72
      %s89 = sphi 0, %s73
      %s93 = sphi 0, %s93
      %s95 = sphi 0, %s93
      %s96 = sphi 0, %s95
      %s110 = sphi 0, %s96
      %s114 = sphi 0, %s114
      %s116 = sphi 0, %s114
      %s117 = sphi 0, %s116
      %s131 = sphi 0, %s117
      %s137 = sphi 0, %s139
      %s140 = sphi 0, %s137
      %s141 = sphi 0, %s140
      %s157 = sphi 0, %s141
    $region4: #{tpu_custom_call.1} parent=1 // loop_header_branch
      %22 = sbr.rel (%p20) target = $region8
    $region5: #{tpu_custom_call.1} parent=1 // loop_body
      %s24 = ssub.s32 %s19, 1
      %s25 = ssub.s32 %s19, 2
      %s32 = sadd.s32 1, %s27
      %p33 = scmp.ge.s32.totalorder %s32, 2
      %s34 = scalar_select %p33, 0, %s32
      %s35 = sadd.s32 1, %s26
      %s36 = scalar_select %p33, %s35, %s26
      %p37 = scmp.ge.s32.totalorder %s36, 2
      %s38 = scalar_select %p37, 0, %s36
      %s39 = ssub.s32 %s26, %s38
      %s40 = ssub.s32 %s27, %s34
      %s41 = sor.u32 %s39, %s40
      %p42 = scmp.eq.s32.totalorder %s41, 0
      %s44 = sadd.s32 %s43, 1
      %s45 = scalar_select %p42, %s43, %s44
      %p48 = pneg %p42
      %p49 = scmp.eq.s32.totalorder %s19, 3
      %p50 = por %p48, %p49
      %p51 = scmp.ne.s32.totalorder %s43, %s46
      %p52 = scmp.eq.s32.totalorder %s19, 0
      %p53 = por %p51, %p52
      %p54 = scmp.ne.s32.totalorder %s43, %s46
      %p55 = scmp.eq.s32.totalorder %s24, 3
      %p56 = por %p54, %p55
      %p57 = scmp.ne.s32.totalorder %s46, %s47
      %p58 = scmp.eq.s32.totalorder %s24, 0
      %p59 = por %p57, %p58
      %p60 = scmp.ne.s32.totalorder %s46, %s47
      %p61 = scmp.eq.s32.totalorder %s25, 3
      %p62 = por %p60, %p61
      %p64 = scmp.ne.s32.totalorder %s47, %s63
      %p65 = scmp.eq.s32.totalorder %s25, 0
      %p66 = por %p64, %p65
      %s67 = ssub.s32 %s27, %s34
      %p68 = scmp.eq.s32.totalorder %s67, 0
      %s70 = sadd.s32 %s69, 1
      %s71 = scalar_select %p68, %s69, %s70
      %p74 = pneg %p68
      %p75 = scmp.eq.s32.totalorder %s19, 3
      %p76 = por %p74, %p75
      %p77 = scmp.ne.s32.totalorder %s69, %s72
      %p78 = scmp.eq.s32.totalorder %s19, 0
      %p79 = por %p77, %p78
      %p80 = scmp.ne.s32.totalorder %s69, %s72
      %p81 = scmp.eq.s32.totalorder %s24, 3
      %p82 = por %p80, %p81
      %p83 = scmp.ne.s32.totalorder %s72, %s73
      %p84 = scmp.eq.s32.totalorder %s24, 0
      %p85 = por %p83, %p84
      %p86 = scmp.ne.s32.totalorder %s72, %s73
      %p87 = scmp.eq.s32.totalorder %s25, 3
      %p88 = por %p86, %p87
      %p90 = scmp.ne.s32.totalorder %s73, %s89
      %p91 = scmp.eq.s32.totalorder %s25, 0
      %p92 = por %p90, %p91
      %s94 = sadd.s32 %s93, 1
      %p97 = scmp.eq.s32.totalorder %s19, 3
      %p98 = scmp.ne.s32.totalorder %s93, %s95
      %p99 = scmp.eq.s32.totalorder %s19, 0
      %p100 = por %p98, %p99
      %p101 = scmp.ne.s32.totalorder %s93, %s95
      %p102 = scmp.eq.s32.totalorder %s24, 3
      %p103 = por %p101, %p102
      %p104 = scmp.ne.s32.totalorder %s95, %s96
      %p105 = scmp.eq.s32.totalorder %s24, 0
      %p106 = por %p104, %p105
      %p107 = scmp.ne.s32.totalorder %s95, %s96
      %p108 = scmp.eq.s32.totalorder %s25, 3
      %p109 = por %p107, %p108
      %p111 = scmp.ne.s32.totalorder %s96, %s110
      %p112 = scmp.eq.s32.totalorder %s25, 0
      %p113 = por %p111, %p112
      %s115 = sadd.s32 %s114, 1
      %p118 = scmp.eq.s32.totalorder %s19, 3
      %p119 = scmp.ne.s32.totalorder %s114, %s116
      %p120 = scmp.eq.s32.totalorder %s19, 0
      %p121 = por %p119, %p120
      %p122 = scmp.ne.s32.totalorder %s114, %s116
      %p123 = scmp.eq.s32.totalorder %s24, 3
      %p124 = por %p122, %p123
      %p125 = scmp.ne.s32.totalorder %s116, %s117
      %p126 = scmp.eq.s32.totalorder %s24, 0
      %p127 = por %p125, %p126
      %p128 = scmp.ne.s32.totalorder %s116, %s117
      %p129 = scmp.eq.s32.totalorder %s25, 3
      %p130 = por %p128, %p129
      %p132 = scmp.ne.s32.totalorder %s117, %s131
      %p133 = scmp.eq.s32.totalorder %s25, 0
      %p134 = por %p132, %p133
      %s135 = ssub.s32 %s26, %s38
      %p136 = scmp.eq.s32.totalorder %s135, 0
      %s138 = sadd.s32 %s137, 1
      %s139 = scalar_select %p136, %s137, %s138
      %p142 = pneg %p136
      %p143 = scmp.eq.s32.totalorder %s19, 3
      %p144 = por %p142, %p143
      %p145 = scmp.ne.s32.totalorder %s137, %s140
      %p146 = scmp.eq.s32.totalorder %s19, 0
      %p147 = por %p145, %p146
      %p148 = scmp.ne.s32.totalorder %s137, %s140
      %p149 = scmp.eq.s32.totalorder %s24, 3
      %p150 = por %p148, %p149
      %p151 = scmp.ne.s32.totalorder %s140, %s141
      %p152 = scmp.eq.s32.totalorder %s24, 0
      %p153 = por %p151, %p152
      %p154 = scmp.ne.s32.totalorder %s140, %s141
      %p155 = scmp.eq.s32.totalorder %s25, 3
      %p156 = por %p154, %p155
      %p158 = scmp.ne.s32.totalorder %s141, %s157
      %p159 = scmp.eq.s32.totalorder %s25, 0
      %p160 = por %p158, %p159
      %p161 = scmp.le.s32.totalorder 1, %s19
      %p162 = scmp.lt.s32.totalorder %s19, 5
      %p163 = pnand %p161, %p162
      %p164 = pneg %p163
      // Predicated region
      $region9: #{tpu_custom_call.1} parent=5 // pred_check
        _
      $region10: #{tpu_custom_call.1} parent=5 // pred_check_branch
        %166 = sbr.rel (%p163) target = $region12
      $region11: #{tpu_custom_call.1} parent=5 // pred_region
        %s167 = ssub.s32 %s19, 1
        // Predicated region
        $region13: #{tpu_custom_call.1} parent=11 // pred_check
          %p168 = pneg %p106
        $region14: #{tpu_custom_call.1} parent=11 // pred_check_branch
          %170 = sbr.rel (%p168) target = $region16
        $region15: #{tpu_custom_call.1} parent=11 // pred_region
          %s172 = ssub.s32 2048, 2048
          %173 = vsyncadd [#allocation7], %s172
          %s174 = sshll.u32 [#allocation8], 4
          %s175 = int_to_ptr.vmem [resolvable:$true] %s174
          %180 = dma.hbm_to_vmem [thread:$0]  %s2, 2048, %s175, [#allocation7], 128, 128, 8
        $region16: #{tpu_custom_call.1} parent=11 // pred_fallthru
          _
        // Predicated region
        $region17: #{tpu_custom_call.1} parent=11 // pred_check
          %p181 = pneg %p127
        $region18: #{tpu_custom_call.1} parent=11 // pred_check_branch
          %183 = sbr.rel (%p181) target = $region20
        $region19: #{tpu_custom_call.1} parent=11 // pred_region
          _
        $region20: #{tpu_custom_call.1} parent=11 // pred_fallthru
          _
      $region12: #{tpu_custom_call.1} parent=5 // pred_fallthru
        _
      %p184 = scmp.lt.s32.totalorder %s19, 4
      // Predicated region
      $region21: #{tpu_custom_call.1} parent=5 // pred_check
        %p185 = pneg %p184
      $region22: #{tpu_custom_call.1} parent=5 // pred_check_branch
        %187 = sbr.rel (%p185) target = $region24
      $region23: #{tpu_custom_call.1} parent=5 // pred_region
        // Predicated region
        $region25: #{tpu_custom_call.1} parent=23 // pred_check
          %p188 = pneg %p53
        $region26: #{tpu_custom_call.1} parent=23 // pred_check_branch
          %190 = sbr.rel (%p188) target = $region28
        $region27: #{tpu_custom_call.1} parent=23 // pred_region
          %s191 = sand.u32 %s43, 1
          %s192 = scalar_lea.sflag [#allocation4], %s191
          %s193 = sand.u32 %s43, 1
          %s194 = smul.addr %s193, 512
          %s195 = scalar_lea.vmem [#allocation3], %s194
          %s196 = smul.u32 32, %s26
          %s197 = smul.u32 2, %s27
          %s199 = ssub.s32 8192, 8192
          %200 = vsyncadd %s192, %s199
          %s201 = smul.addr %s196, 4
          %s202 = sadd.s32 %s197, %s201
          %s203 = smul.addr %s202, 128
          %s204 = scalar_lea.hbm %s0, %s203
          %s205 = sshll.u32 %s195, 4
          %s206 = int_to_ptr.vmem [resolvable:$true] %s205
          %211 = dma.hbm_to_vmem [thread:$0]  %s204, 8192, %s206, %s192, 512, 256, 16
        $region28: #{tpu_custom_call.1} parent=23 // pred_fallthru
          _
        // Predicated region
        $region29: #{tpu_custom_call.1} parent=23 // pred_check
          %p212 = pneg %p79
        $region30: #{tpu_custom_call.1} parent=23 // pred_check_branch
          %214 = sbr.rel (%p212) target = $region32
        $region31: #{tpu_custom_call.1} parent=23 // pred_region
          %s215 = sand.u32 %s19, 1
          %s216 = scalar_lea.sflag [#allocation7], %s215
          %s217 = sand.u32 %s69, 1
          %s218 = smul.addr %s217, 256
          %s219 = scalar_lea.vmem [#allocation6], %s218
          %s220 = smul.u32 32, %s27
          %s222 = ssub.s32 4096, 4096
          %223 = vsyncadd %s216, %s222
          %s224 = smul.addr %s220, 128
          %s225 = scalar_lea.hbm %s1, %s224
          %s226 = sshll.u32 %s219, 4
          %s227 = int_to_ptr.vmem [resolvable:$true] %s226
          %232 = dma.hbm_to_vmem [thread:$0]  %s225, 4096, %s227, %s216, 128, 128, 8
        $region32: #{tpu_custom_call.1} parent=23 // pred_fallthru
          _
      $region24: #{tpu_custom_call.1} parent=5 // pred_fallthru
        _
      %p233 = scmp.le.s32.totalorder 1, %s19
      %p234 = scmp.lt.s32.totalorder %s19, 5
      %p235 = pnand %p233, %p234
      %p236 = pneg %p235
      // Predicated region
      $region33: #{tpu_custom_call.1} parent=5 // pred_check
        _
      $region34: #{tpu_custom_call.1} parent=5 // pred_check_branch
        %238 = sbr.rel (%p235) target = $region36
      $region35: #{tpu_custom_call.1} parent=5 // pred_region
        %s239 = ssub.s32 %s19, 1
        %s240 = sand.u32 %s46, 1
        %s241 = scalar_lea.sflag [#allocation4], %s240
        %s242 = sand.u32 %s46, 1
        %s243 = smul.addr %s242, 512
        %s244 = scalar_lea.vmem [#allocation3], %s243
        // Predicated region
        $region37: #{tpu_custom_call.1} parent=35 // pred_check
          %p245 = pneg %p59
        $region38: #{tpu_custom_call.1} parent=35 // pred_check_branch
          %247 = sbr.rel (%p245) target = $region40
        $region39: #{tpu_custom_call.1} parent=35 // pred_region
          %248 = dma.done %s241, 8192
        $region40: #{tpu_custom_call.1} parent=35 // pred_fallthru
          _
        %s249 = sand.u32 %s24, 1
        %s250 = scalar_lea.sflag [#allocation7], %s249
        %s251 = sand.u32 %s72, 1
        %s252 = smul.addr %s251, 256
        %s253 = scalar_lea.vmem [#allocation6], %s252
        // Predicated region
        $region41: #{tpu_custom_call.1} parent=35 // pred_check
          %p254 = pneg %p85
        $region42: #{tpu_custom_call.1} parent=35 // pred_check_branch
          %256 = sbr.rel (%p254) target = $region44
        $region43: #{tpu_custom_call.1} parent=35 // pred_region
          %257 = dma.done %s250, 4096
        $region44: #{tpu_custom_call.1} parent=35 // pred_fallthru
          _
        // Predicated region
        $region45: #{tpu_custom_call.1} parent=35 // pred_check
          %p258 = pneg %p106
        $region46: #{tpu_custom_call.1} parent=35 // pred_check_branch
          %260 = sbr.rel (%p258) target = $region48
        $region47: #{tpu_custom_call.1} parent=35 // pred_region
          %261 = dma.done [#allocation7], 2048
        $region48: #{tpu_custom_call.1} parent=35 // pred_fallthru
          _
        %s262 = sand.u32 %s46, 1
        %s263 = scalar_lea.sflag [#allocation4], %s262
        %s264 = sand.u32 %s46, 1
        %s265 = smul.addr %s264, 512
        %s266 = scalar_lea.vmem [#allocation3], %s265
        %p267 = pneg %p59
        %p268 = pneg %p56
        %s269 = sand.u32 %s24, 1
        %s270 = scalar_lea.sflag [#allocation7], %s269
        %s271 = sand.u32 %s72, 1
        %s272 = smul.addr %s271, 256
        %s273 = scalar_lea.vmem [#allocation6], %s272
        %p274 = pneg %p85
        %p275 = pneg %p82
        %p276 = pneg %p106
        %p277 = pneg %p103
        %p278 = pneg %p127
        %p279 = pneg %p124
        %p280 = pneg %p153
        %p281 = pneg %p150
        %s282 = sand.u32 %s140, 1
        %s283 = scalar_lea.sflag [#allocation5], %s282
        %s284 = sand.u32 %s140, 1
        %s285 = smul.addr %s284, 256
        %s286 = scalar_lea.vmem [#allocation9], %s285
        %s287 = smul.u32 32, %s28
        %s288 = smul.u32 2, %s29
        %s289 = smul.u32 32, %s29
        %s290 = smul.u32 32, %s28
        %p291 = scmp.eq.s32.totalorder %s29, 0
        // Predicated region
        $region49: #{tpu_custom_call.1} parent=35 // pred_check
          %p292 = pneg %p291
        $region50: #{tpu_custom_call.1} parent=35 // pred_check_branch
          %294 = sbr.rel (%p292) target = $region52
        $region51: #{tpu_custom_call.1} parent=35 // pred_region
          %295 = vst [vmem:[#allocation2] sm:$0xff] 0.0
          %296 = vst [vmem:[#allocation2 + $0x8] sm:$0xff] 0.0
          %297 = vst [vmem:[#allocation2 + $0x10] sm:$0xff] 0.0
          %298 = vst [vmem:[#allocation2 + $0x18] sm:$0xff] 0.0
          %299 = vst [vmem:[#allocation2 + $0x20] sm:$0xff] 0.0
          %300 = vst [vmem:[#allocation2 + $0x28] sm:$0xff] 0.0
          %301 = vst [vmem:[#allocation2 + $0x30] sm:$0xff] 0.0
          %302 = vst [vmem:[#allocation2 + $0x38] sm:$0xff] 0.0
          %303 = vst [vmem:[#allocation2 + $0x40] sm:$0xff] 0.0
          %304 = vst [vmem:[#allocation2 + $0x48] sm:$0xff] 0.0
          %305 = vst [vmem:[#allocation2 + $0x50] sm:$0xff] 0.0
          %306 = vst [vmem:[#allocation2 + $0x58] sm:$0xff] 0.0
          %307 = vst [vmem:[#allocation2 + $0x60] sm:$0xff] 0.0
          %308 = vst [vmem:[#allocation2 + $0x68] sm:$0xff] 0.0
          %309 = vst [vmem:[#allocation2 + $0x70] sm:$0xff] 0.0
          %310 = vst [vmem:[#allocation2 + $0x78] sm:$0xff] 0.0
          %311 = vst [vmem:[#allocation2 + $0x80] sm:$0xff] 0.0
          %312 = vst [vmem:[#allocation2 + $0x88] sm:$0xff] 0.0
          %313 = vst [vmem:[#allocation2 + $0x90] sm:$0xff] 0.0
          %314 = vst [vmem:[#allocation2 + $0x98] sm:$0xff] 0.0
          %315 = vst [vmem:[#allocation2 + $0xa0] sm:$0xff] 0.0
          %316 = vst [vmem:[#allocation2 + $0xa8] sm:$0xff] 0.0
          %317 = vst [vmem:[#allocation2 + $0xb0] sm:$0xff] 0.0
          %318 = vst [vmem:[#allocation2 + $0xb8] sm:$0xff] 0.0
          %319 = vst [vmem:[#allocation2 + $0xc0] sm:$0xff] 0.0
          %320 = vst [vmem:[#allocation2 + $0xc8] sm:$0xff] 0.0
          %321 = vst [vmem:[#allocation2 + $0xd0] sm:$0xff] 0.0
          %322 = vst [vmem:[#allocation2 + $0xd8] sm:$0xff] 0.0
          %323 = vst [vmem:[#allocation2 + $0xe0] sm:$0xff] 0.0
          %324 = vst [vmem:[#allocation2 + $0xe8] sm:$0xff] 0.0
          %325 = vst [vmem:[#allocation2 + $0xf0] sm:$0xff] 0.0
          %326 = vst [vmem:[#allocation2 + $0xf8] sm:$0xff] 0.0
        $region52: #{tpu_custom_call.1} parent=35 // pred_fallthru
          _
        %v327 = vld [vmem:[%s253] sm:$0xff]
        %v328 = vld [vmem:[%s253 + $0x8] sm:$0xff]
        %v329 = vld [vmem:[%s253 + $0x10] sm:$0xff]
        %v330 = vld [vmem:[%s253 + $0x18] sm:$0xff]
        %v331 = vld [vmem:[%s253 + $0x20] sm:$0xff]
        %v332 = vld [vmem:[%s253 + $0x28] sm:$0xff]
        %v333 = vld [vmem:[%s253 + $0x30] sm:$0xff]
        %v334 = vld [vmem:[%s253 + $0x38] sm:$0xff]
        %v335 = vld [vmem:[%s253 + $0x40] sm:$0xff]
        %v336 = vld [vmem:[%s253 + $0x48] sm:$0xff]
        %v337 = vld [vmem:[%s253 + $0x50] sm:$0xff]
        %v338 = vld [vmem:[%s253 + $0x58] sm:$0xff]
        %v339 = vld [vmem:[%s253 + $0x60] sm:$0xff]
        %v340 = vld [vmem:[%s253 + $0x68] sm:$0xff]
        %v341 = vld [vmem:[%s253 + $0x70] sm:$0xff]
        %v342 = vld [vmem:[%s253 + $0x78] sm:$0xff]
        %v343 = vld [vmem:[%s253 + $0x80] sm:$0xff]
        %v344 = vld [vmem:[%s253 + $0x88] sm:$0xff]
        %v345 = vld [vmem:[%s253 + $0x90] sm:$0xff]
        %v346 = vld [vmem:[%s253 + $0x98] sm:$0xff]
        %v347 = vld [vmem:[%s253 + $0xa0] sm:$0xff]
        %v348 = vld [vmem:[%s253 + $0xa8] sm:$0xff]
        %v349 = vld [vmem:[%s253 + $0xb0] sm:$0xff]
        %v350 = vld [vmem:[%s253 + $0xb8] sm:$0xff]
        %v351 = vld [vmem:[%s253 + $0xc0] sm:$0xff]
        %v352 = vld [vmem:[%s253 + $0xc8] sm:$0xff]
        %v353 = vld [vmem:[%s253 + $0xd0] sm:$0xff]
        %v354 = vld [vmem:[%s253 + $0xd8] sm:$0xff]
        %v355 = vld [vmem:[%s253 + $0xe0] sm:$0xff]
        %v356 = vld [vmem:[%s253 + $0xe8] sm:$0xff]
        %v357 = vld [vmem:[%s253 + $0xf0] sm:$0xff]
        %v358 = vld [vmem:[%s253 + $0xf8] sm:$0xff]
        %v359 = vld [vmem:[#allocation8] sm:$0xff]
        %v360 = vld [vmem:[#allocation8 + $0x8] sm:$0xff]
        %v361 = vld [vmem:[#allocation8 + $0x10] sm:$0xff]
        %v362 = vld [vmem:[#allocation8 + $0x18] sm:$0xff]
        %v363 = vld [vmem:[#allocation8 + $0x20] sm:$0xff]
        %v364 = vld [vmem:[#allocation8 + $0x28] sm:$0xff]
        %v365 = vld [vmem:[#allocation8 + $0x30] sm:$0xff]
        %v366 = vld [vmem:[#allocation8 + $0x38] sm:$0xff]
        %v367 = vld [vmem:[#allocation8 + $0x40] sm:$0xff]
        %v368 = vld [vmem:[#allocation8 + $0x48] sm:$0xff]
        %v369 = vld [vmem:[#allocation8 + $0x50] sm:$0xff]
        %v370 = vld [vmem:[#allocation8 + $0x58] sm:$0xff]
        %v371 = vld [vmem:[#allocation8 + $0x60] sm:$0xff]
        %v372 = vld [vmem:[#allocation8 + $0x68] sm:$0xff]
        %v373 = vld [vmem:[#allocation8 + $0x70] sm:$0xff]
        %v374 = vld [vmem:[#allocation8 + $0x78] sm:$0xff]
        %375 = vmatprep.subr.mxu0 0.0
        %376 = vmatpush1.msra.mxu0 %v374
        %377 = vmatprep.subr.mxu0 0.0
        %378 = vmatpush1.msra.mxu0 %v373
        %379 = vmatprep.subr.mxu0 0.0
        %380 = vmatpush1.msra.mxu0 %v372
        %381 = vmatprep.subr.mxu0 0.0
        %382 = vmatpush1.msra.mxu0 %v371
        %383 = vmatprep.subr.mxu0 0.0
        %384 = vmatpush1.msra.mxu0 %v370
        %385 = vmatprep.subr.mxu0 0.0
        %386 = vmatpush1.msra.mxu0 %v369
        %387 = vmatprep.subr.mxu0 0.0
        %388 = vmatpush1.msra.mxu0 %v368
        %389 = vmatprep.subr.mxu0 0.0
        %390 = vmatpush1.msra.mxu0 %v367
        %391 = vmatprep.subr.mxu0 0.0
        %392 = vmatpush1.msra.mxu0 %v366
        %393 = vmatprep.subr.mxu0 0.0
        %394 = vmatpush1.msra.mxu0 %v365
        %395 = vmatprep.subr.mxu0 0.0
        %396 = vmatpush1.msra.mxu0 %v364
        %397 = vmatprep.subr.mxu0 0.0
        %398 = vmatpush1.msra.mxu0 %v363
        %399 = vmatprep.subr.mxu0 0.0
        %400 = vmatpush1.msra.mxu0 %v362
        %401 = vmatprep.subr.mxu0 0.0
        %402 = vmatpush1.msra.mxu0 %v361
        %403 = vmatprep.subr.mxu0 0.0
        %404 = vmatpush1.msra.mxu0 %v360
        %405 = vmatprep.subr.mxu0 0.0
        %406 = vmatpush1.msra.mxu0 %v359
        %407 = vmatprep.subr.mxu0 0.0
        %408 = vmatpush2.msra.mxu0 0.0
        %409 = vmatprep.subr.mxu0 0.0
        %410 = vmatpush2.msra.mxu0 0.0
        %411 = vmatprep.subr.mxu0 0.0
        %412 = vmatpush2.msra.mxu0 0.0
        %413 = vmatprep.subr.mxu0 0.0
        %414 = vmatpush2.msra.mxu0 0.0
        %415 = vmatprep.subr.mxu0 0.0
        %416 = vmatpush2.msra.mxu0 0.0
        %417 = vmatprep.subr.mxu0 0.0
        %418 = vmatpush2.msra.mxu0 0.0
        %419 = vmatprep.subr.mxu0 0.0
        %420 = vmatpush2.msra.mxu0 0.0
        %421 = vmatprep.subr.mxu0 0.0
        %422 = vmatpush2.msra.mxu0 0.0
        %423 = vmatprep.subr.mxu0 0.0
        %424 = vmatpush2.msra.mxu0 0.0
        %425 = vmatprep.subr.mxu0 0.0
        %426 = vmatpush2.msra.mxu0 0.0
        %427 = vmatprep.subr.mxu0 0.0
        %428 = vmatpush2.msra.mxu0 0.0
        %429 = vmatprep.subr.mxu0 0.0
        %430 = vmatpush2.msra.mxu0 0.0
        %431 = vmatprep.subr.mxu0 0.0
        %432 = vmatpush2.msra.mxu0 0.0
        %433 = vmatprep.subr.mxu0 0.0
        %434 = vmatpush2.msra.mxu0 0.0
        %435 = vmatprep.subr.mxu0 0.0
        %436 = vmatpush2.msra.mxu0 0.0
        %437 = vmatprep.subr.mxu0 0.0
        %438 = vmatpush2.msra.mxu0 0.0
        %439 = vmatprep.mubr.f32.mxu0 0.0
        %440 = vmatmul.mubr.f32.gmra.mxu0 %v327
        %v441 = vpop.f32.mrf.mxu0
        %v442 = vadd.f32 0.0, %v441
        %v443 = vpop.f32.mrf.mxu0
        %444 = vmatprep.mubr.f32.mxu0 0.0
        %445 = vmatmul.mubr.f32.gmra.mxu0 %v328
        %v446 = vpop.f32.mrf.mxu0
        %v447 = vadd.f32 0.0, %v446
        %v448 = vpop.f32.mrf.mxu0
        %449 = vmatprep.mubr.f32.mxu0 0.0
        %450 = vmatmul.mubr.f32.gmra.mxu0 %v329
        %v451 = vpop.f32.mrf.mxu0
        %v452 = vadd.f32 0.0, %v451
        %v453 = vpop.f32.mrf.mxu0
        %454 = vmatprep.mubr.f32.mxu0 0.0
        %455 = vmatmul.mubr.f32.gmra.mxu0 %v330
        %v456 = vpop.f32.mrf.mxu0
        %v457 = vadd.f32 0.0, %v456
        %v458 = vpop.f32.mrf.mxu0
        %459 = vmatprep.mubr.f32.mxu0 0.0
        %460 = vmatmul.mubr.f32.gmra.mxu0 %v331
        %v461 = vpop.f32.mrf.mxu0
        %v462 = vadd.f32 0.0, %v461
        %v463 = vpop.f32.mrf.mxu0
        %464 = vmatprep.mubr.f32.mxu0 0.0
        %465 = vmatmul.mubr.f32.gmra.mxu0 %v332
        %v466 = vpop.f32.mrf.mxu0
        %v467 = vadd.f32 0.0, %v466
        %v468 = vpop.f32.mrf.mxu0
        %469 = vmatprep.mubr.f32.mxu0 0.0
        %470 = vmatmul.mubr.f32.gmra.mxu0 %v333
        %v471 = vpop.f32.mrf.mxu0
        %v472 = vadd.f32 0.0, %v471
        %v473 = vpop.f32.mrf.mxu0
        %474 = vmatprep.mubr.f32.mxu0 0.0
        %475 = vmatmul.mubr.f32.gmra.mxu0 %v334
        %v476 = vpop.f32.mrf.mxu0
        %v477 = vadd.f32 0.0, %v476
        %v478 = vpop.f32.mrf.mxu0
        %479 = vmatprep.mubr.f32.mxu0 0.0
        %480 = vmatmul.mubr.f32.gmra.mxu0 %v335
        %v481 = vpop.f32.mrf.mxu0
        %v482 = vadd.f32 0.0, %v481
        %v483 = vpop.f32.mrf.mxu0
        %484 = vmatprep.mubr.f32.mxu0 0.0
        %485 = vmatmul.mubr.f32.gmra.mxu0 %v336
        %v486 = vpop.f32.mrf.mxu0
        %v487 = vadd.f32 0.0, %v486
        %v488 = vpop.f32.mrf.mxu0
        %489 = vmatprep.mubr.f32.mxu0 0.0
        %490 = vmatmul.mubr.f32.gmra.mxu0 %v337
        %v491 = vpop.f32.mrf.mxu0
        %v492 = vadd.f32 0.0, %v491
        %v493 = vpop.f32.mrf.mxu0
        %494 = vmatprep.mubr.f32.mxu0 0.0
        %495 = vmatmul.mubr.f32.gmra.mxu0 %v338
        %v496 = vpop.f32.mrf.mxu0
        %v497 = vadd.f32 0.0, %v496
        %v498 = vpop.f32.mrf.mxu0
        %499 = vmatprep.mubr.f32.mxu0 0.0
        %500 = vmatmul.mubr.f32.gmra.mxu0 %v339
        %v501 = vpop.f32.mrf.mxu0
        %v502 = vadd.f32 0.0, %v501
        %v503 = vpop.f32.mrf.mxu0
        %504 = vmatprep.mubr.f32.mxu0 0.0
        %505 = vmatmul.mubr.f32.gmra.mxu0 %v340
        %v506 = vpop.f32.mrf.mxu0
        %v507 = vadd.f32 0.0, %v506
        %v508 = vpop.f32.mrf.mxu0
        %509 = vmatprep.mubr.f32.mxu0 0.0
        %510 = vmatmul.mubr.f32.gmra.mxu0 %v341
        %v511 = vpop.f32.mrf.mxu0
        %v512 = vadd.f32 0.0, %v511
        %v513 = vpop.f32.mrf.mxu0
        %514 = vmatprep.mubr.f32.mxu0 0.0
        %515 = vmatmul.mubr.f32.gmra.mxu0 %v342
        %v516 = vpop.f32.mrf.mxu0
        %v517 = vadd.f32 0.0, %v516
        %v518 = vpop.f32.mrf.mxu0
        %519 = vmatprep.mubr.f32.mxu0 0.0
        %520 = vmatmul.mubr.f32.gmra.mxu0 %v343
        %v521 = vpop.f32.mrf.mxu0
        %v522 = vadd.f32 0.0, %v521
        %v523 = vpop.f32.mrf.mxu0
        %524 = vmatprep.mubr.f32.mxu0 0.0
        %525 = vmatmul.mubr.f32.gmra.mxu0 %v344
        %v526 = vpop.f32.mrf.mxu0
        %v527 = vadd.f32 0.0, %v526
        %v528 = vpop.f32.mrf.mxu0
        %529 = vmatprep.mubr.f32.mxu0 0.0
        %530 = vmatmul.mubr.f32.gmra.mxu0 %v345
        %v531 = vpop.f32.mrf.mxu0
        %v532 = vadd.f32 0.0, %v531
        %v533 = vpop.f32.mrf.mxu0
        %534 = vmatprep.mubr.f32.mxu0 0.0
        %535 = vmatmul.mubr.f32.gmra.mxu0 %v346
        %v536 = vpop.f32.mrf.mxu0
        %v537 = vadd.f32 0.0, %v536
        %v538 = vpop.f32.mrf.mxu0
        %539 = vmatprep.mubr.f32.mxu0 0.0
        %540 = vmatmul.mubr.f32.gmra.mxu0 %v347
        %v541 = vpop.f32.mrf.mxu0
        %v542 = vadd.f32 0.0, %v541
        %v543 = vpop.f32.mrf.mxu0
        %544 = vmatprep.mubr.f32.mxu0 0.0
        %545 = vmatmul.mubr.f32.gmra.mxu0 %v348
        %v546 = vpop.f32.mrf.mxu0
        %v547 = vadd.f32 0.0, %v546
        %v548 = vpop.f32.mrf.mxu0
        %549 = vmatprep.mubr.f32.mxu0 0.0
        %550 = vmatmul.mubr.f32.gmra.mxu0 %v349
        %v551 = vpop.f32.mrf.mxu0
        %v552 = vadd.f32 0.0, %v551
        %v553 = vpop.f32.mrf.mxu0
        %554 = vmatprep.mubr.f32.mxu0 0.0
        %555 = vmatmul.mubr.f32.gmra.mxu0 %v350
        %v556 = vpop.f32.mrf.mxu0
        %v557 = vadd.f32 0.0, %v556
        %v558 = vpop.f32.mrf.mxu0
        %559 = vmatprep.mubr.f32.mxu0 0.0
        %560 = vmatmul.mubr.f32.gmra.mxu0 %v351
        %v561 = vpop.f32.mrf.mxu0
        %v562 = vadd.f32 0.0, %v561
        %v563 = vpop.f32.mrf.mxu0
        %564 = vmatprep.mubr.f32.mxu0 0.0
        %565 = vmatmul.mubr.f32.gmra.mxu0 %v352
        %v566 = vpop.f32.mrf.mxu0
        %v567 = vadd.f32 0.0, %v566
        %v568 = vpop.f32.mrf.mxu0
        %569 = vmatprep.mubr.f32.mxu0 0.0
        %570 = vmatmul.mubr.f32.gmra.mxu0 %v353
        %v571 = vpop.f32.mrf.mxu0
        %v572 = vadd.f32 0.0, %v571
        %v573 = vpop.f32.mrf.mxu0
        %574 = vmatprep.mubr.f32.mxu0 0.0
        %575 = vmatmul.mubr.f32.gmra.mxu0 %v354
        %v576 = vpop.f32.mrf.mxu0
        %v577 = vadd.f32 0.0, %v576
        %v578 = vpop.f32.mrf.mxu0
        %579 = vmatprep.mubr.f32.mxu0 0.0
        %580 = vmatmul.mubr.f32.gmra.mxu0 %v355
        %v581 = vpop.f32.mrf.mxu0
        %v582 = vadd.f32 0.0, %v581
        %v583 = vpop.f32.mrf.mxu0
        %584 = vmatprep.mubr.f32.mxu0 0.0
        %585 = vmatmul.mubr.f32.gmra.mxu0 %v356
        %v586 = vpop.f32.mrf.mxu0
        %v587 = vadd.f32 0.0, %v586
        %v588 = vpop.f32.mrf.mxu0
        %589 = vmatprep.mubr.f32.mxu0 0.0
        %590 = vmatmul.mubr.f32.gmra.mxu0 %v357
        %v591 = vpop.f32.mrf.mxu0
        %v592 = vadd.f32 0.0, %v591
        %v593 = vpop.f32.mrf.mxu0
        %594 = vmatprep.mubr.f32.mxu0 0.0
        %595 = vmatmul.mubr.f32.gmra.mxu0 %v358
        %v596 = vpop.f32.mrf.mxu0
        %v597 = vadd.f32 0.0, %v596
        %v598 = vpop.f32.mrf.mxu0
        %599 = vdwg.mxu0
        %v600 = vld [vmem:[#allocation2] sm:$0xff]
        %v601 = vld [vmem:[#allocation2 + $0x8] sm:$0xff]
        %v602 = vld [vmem:[#allocation2 + $0x10] sm:$0xff]
        %v603 = vld [vmem:[#allocation2 + $0x18] sm:$0xff]
        %v604 = vld [vmem:[#allocation2 + $0x20] sm:$0xff]
        %v605 = vld [vmem:[#allocation2 + $0x28] sm:$0xff]
        %v606 = vld [vmem:[#allocation2 + $0x30] sm:$0xff]
        %v607 = vld [vmem:[#allocation2 + $0x38] sm:$0xff]
        %v608 = vld [vmem:[#allocation2 + $0x40] sm:$0xff]
        %v609 = vld [vmem:[#allocation2 + $0x48] sm:$0xff]
        %v610 = vld [vmem:[#allocation2 + $0x50] sm:$0xff]
        %v611 = vld [vmem:[#allocation2 + $0x58] sm:$0xff]
        %v612 = vld [vmem:[#allocation2 + $0x60] sm:$0xff]
        %v613 = vld [vmem:[#allocation2 + $0x68] sm:$0xff]
        %v614 = vld [vmem:[#allocation2 + $0x70] sm:$0xff]
        %v615 = vld [vmem:[#allocation2 + $0x78] sm:$0xff]
        %v616 = vld [vmem:[#allocation2 + $0x80] sm:$0xff]
        %v617 = vld [vmem:[#allocation2 + $0x88] sm:$0xff]
        %v618 = vld [vmem:[#allocation2 + $0x90] sm:$0xff]
        %v619 = vld [vmem:[#allocation2 + $0x98] sm:$0xff]
        %v620 = vld [vmem:[#allocation2 + $0xa0] sm:$0xff]
        %v621 = vld [vmem:[#allocation2 + $0xa8] sm:$0xff]
        %v622 = vld [vmem:[#allocation2 + $0xb0] sm:$0xff]
        %v623 = vld [vmem:[#allocation2 + $0xb8] sm:$0xff]
        %v624 = vld [vmem:[#allocation2 + $0xc0] sm:$0xff]
        %v625 = vld [vmem:[#allocation2 + $0xc8] sm:$0xff]
        %v626 = vld [vmem:[#allocation2 + $0xd0] sm:$0xff]
        %v627 = vld [vmem:[#allocation2 + $0xd8] sm:$0xff]
        %v628 = vld [vmem:[#allocation2 + $0xe0] sm:$0xff]
        %v629 = vld [vmem:[#allocation2 + $0xe8] sm:$0xff]
        %v630 = vld [vmem:[#allocation2 + $0xf0] sm:$0xff]
        %v631 = vld [vmem:[#allocation2 + $0xf8] sm:$0xff]
        %v632 = vld [vmem:[%s244] sm:$0xff]
        %v633 = vld [vmem:[%s244 + $0x8] sm:$0xff]
        %v634 = vld [vmem:[%s244 + $0x10] sm:$0xff]
        %v635 = vld [vmem:[%s244 + $0x18] sm:$0xff]
        %v636 = vld [vmem:[%s244 + $0x20] sm:$0xff]
        %v637 = vld [vmem:[%s244 + $0x28] sm:$0xff]
        %v638 = vld [vmem:[%s244 + $0x30] sm:$0xff]
        %v639 = vld [vmem:[%s244 + $0x38] sm:$0xff]
        %v640 = vld [vmem:[%s244 + $0x40] sm:$0xff]
        %v641 = vld [vmem:[%s244 + $0x48] sm:$0xff]
        %v642 = vld [vmem:[%s244 + $0x50] sm:$0xff]
        %v643 = vld [vmem:[%s244 + $0x58] sm:$0xff]
        %v644 = vld [vmem:[%s244 + $0x60] sm:$0xff]
        %v645 = vld [vmem:[%s244 + $0x68] sm:$0xff]
        %v646 = vld [vmem:[%s244 + $0x70] sm:$0xff]
        %v647 = vld [vmem:[%s244 + $0x78] sm:$0xff]
        %v648 = vld [vmem:[%s244 + $0x80] sm:$0xff]
        %v649 = vld [vmem:[%s244 + $0x88] sm:$0xff]
        %v650 = vld [vmem:[%s244 + $0x90] sm:$0xff]
        %v651 = vld [vmem:[%s244 + $0x98] sm:$0xff]
        %v652 = vld [vmem:[%s244 + $0xa0] sm:$0xff]
        %v653 = vld [vmem:[%s244 + $0xa8] sm:$0xff]
        %v654 = vld [vmem:[%s244 + $0xb0] sm:$0xff]
        %v655 = vld [vmem:[%s244 + $0xb8] sm:$0xff]
        %v656 = vld [vmem:[%s244 + $0xc0] sm:$0xff]
        %v657 = vld [vmem:[%s244 + $0xc8] sm:$0xff]
        %v658 = vld [vmem:[%s244 + $0xd0] sm:$0xff]
        %v659 = vld [vmem:[%s244 + $0xd8] sm:$0xff]
        %v660 = vld [vmem:[%s244 + $0xe0] sm:$0xff]
        %v661 = vld [vmem:[%s244 + $0xe8] sm:$0xff]
        %v662 = vld [vmem:[%s244 + $0xf0] sm:$0xff]
        %v663 = vld [vmem:[%s244 + $0xf8] sm:$0xff]
        %v664 = vld [vmem:[%s244 + $0x100] sm:$0xff]
        %v665 = vld [vmem:[%s244 + $0x108] sm:$0xff]
        %v666 = vld [vmem:[%s244 + $0x110] sm:$0xff]
        %v667 = vld [vmem:[%s244 + $0x118] sm:$0xff]
        %v668 = vld [vmem:[%s244 + $0x120] sm:$0xff]
        %v669 = vld [vmem:[%s244 + $0x128] sm:$0xff]
        %v670 = vld [vmem:[%s244 + $0x130] sm:$0xff]
        %v671 = vld [vmem:[%s244 + $0x138] sm:$0xff]
        %v672 = vld [vmem:[%s244 + $0x140] sm:$0xff]
        %v673 = vld [vmem:[%s244 + $0x148] sm:$0xff]
        %v674 = vld [vmem:[%s244 + $0x150] sm:$0xff]
        %v675 = vld [vmem:[%s244 + $0x158] sm:$0xff]
        %v676 = vld [vmem:[%s244 + $0x160] sm:$0xff]
        %v677 = vld [vmem:[%s244 + $0x168] sm:$0xff]
        %v678 = vld [vmem:[%s244 + $0x170] sm:$0xff]
        %v679 = vld [vmem:[%s244 + $0x178] sm:$0xff]
        %v680 = vld [vmem:[%s244 + $0x180] sm:$0xff]
        %v681 = vld [vmem:[%s244 + $0x188] sm:$0xff]
        %v682 = vld [vmem:[%s244 + $0x190] sm:$0xff]
        %v683 = vld [vmem:[%s244 + $0x198] sm:$0xff]
        %v684 = vld [vmem:[%s244 + $0x1a0] sm:$0xff]
        %v685 = vld [vmem:[%s244 + $0x1a8] sm:$0xff]
        %v686 = vld [vmem:[%s244 + $0x1b0] sm:$0xff]
        %v687 = vld [vmem:[%s244 + $0x1b8] sm:$0xff]
        %v688 = vld [vmem:[%s244 + $0x1c0] sm:$0xff]
        %v689 = vld [vmem:[%s244 + $0x1c8] sm:$0xff]
        %v690 = vld [vmem:[%s244 + $0x1d0] sm:$0xff]
        %v691 = vld [vmem:[%s244 + $0x1d8] sm:$0xff]
        %v692 = vld [vmem:[%s244 + $0x1e0] sm:$0xff]
        %v693 = vld [vmem:[%s244 + $0x1e8] sm:$0xff]
        %v694 = vld [vmem:[%s244 + $0x1f0] sm:$0xff]
        %v695 = vld [vmem:[%s244 + $0x1f8] sm:$0xff]
        %696 = vmatprep.subr.mxu0 0.0
        %697 = vmatpush1.msra.mxu0 %v517
        %698 = vmatprep.subr.mxu0 0.0
        %699 = vmatpush1.msra.mxu0 %v512
        %700 = vmatprep.subr.mxu0 0.0
        %701 = vmatpush1.msra.mxu0 %v507
        %702 = vmatprep.subr.mxu0 0.0
        %703 = vmatpush1.msra.mxu0 %v502
        %704 = vmatprep.subr.mxu0 0.0
        %705 = vmatpush1.msra.mxu0 %v497
        %706 = vmatprep.subr.mxu0 0.0
        %707 = vmatpush1.msra.mxu0 %v492
        %708 = vmatprep.subr.mxu0 0.0
        %709 = vmatpush1.msra.mxu0 %v487
        %710 = vmatprep.subr.mxu0 0.0
        %711 = vmatpush1.msra.mxu0 %v482
        %712 = vmatprep.subr.mxu0 0.0
        %713 = vmatpush1.msra.mxu0 %v477
        %714 = vmatprep.subr.mxu0 0.0
        %715 = vmatpush1.msra.mxu0 %v472
        %716 = vmatprep.subr.mxu0 0.0
        %717 = vmatpush1.msra.mxu0 %v467
        %718 = vmatprep.subr.mxu0 0.0
        %719 = vmatpush1.msra.mxu0 %v462
        %720 = vmatprep.subr.mxu0 0.0
        %721 = vmatpush1.msra.mxu0 %v457
        %722 = vmatprep.subr.mxu0 0.0
        %723 = vmatpush1.msra.mxu0 %v452
        %724 = vmatprep.subr.mxu0 0.0
        %725 = vmatpush1.msra.mxu0 %v447
        %726 = vmatprep.subr.mxu0 0.0
        %727 = vmatpush1.msra.mxu0 %v442
        %728 = vmatprep.subr.mxu0 0.0
        %729 = vmatpush2.msra.mxu0 %v597
        %730 = vmatprep.subr.mxu0 0.0
        %731 = vmatpush2.msra.mxu0 %v592
        %732 = vmatprep.subr.mxu0 0.0
        %733 = vmatpush2.msra.mxu0 %v587
        %734 = vmatprep.subr.mxu0 0.0
        %735 = vmatpush2.msra.mxu0 %v582
        %736 = vmatprep.subr.mxu0 0.0
        %737 = vmatpush2.msra.mxu0 %v577
        %738 = vmatprep.subr.mxu0 0.0
        %739 = vmatpush2.msra.mxu0 %v572
        %740 = vmatprep.subr.mxu0 0.0
        %741 = vmatpush2.msra.mxu0 %v567
        %742 = vmatprep.subr.mxu0 0.0
        %743 = vmatpush2.msra.mxu0 %v562
        %744 = vmatprep.subr.mxu0 0.0
        %745 = vmatpush2.msra.mxu0 %v557
        %746 = vmatprep.subr.mxu0 0.0
        %747 = vmatpush2.msra.mxu0 %v552
        %748 = vmatprep.subr.mxu0 0.0
        %749 = vmatpush2.msra.mxu0 %v547
        %750 = vmatprep.subr.mxu0 0.0
        %751 = vmatpush2.msra.mxu0 %v542
        %752 = vmatprep.subr.mxu0 0.0
        %753 = vmatpush2.msra.mxu0 %v537
        %754 = vmatprep.subr.mxu0 0.0
        %755 = vmatpush2.msra.mxu0 %v532
        %756 = vmatprep.subr.mxu0 0.0
        %757 = vmatpush2.msra.mxu0 %v527
        %758 = vmatprep.subr.mxu0 0.0
        %759 = vmatpush2.msra.mxu0 %v522
        %760 = vmatprep.mubr.f32.mxu0 %v633
        %761 = vmatmul.mubr.f32.gmra.mxu0 %v632
        %v762 = vpop.f32.mrf.mxu0
        %v763 = vadd.f32 0.0, %v762
        %v764 = vpop.f32.mrf.mxu0
        %765 = vmatprep.mubr.f32.mxu0 %v635
        %766 = vmatmul.mubr.f32.gmra.mxu0 %v634
        %v767 = vpop.f32.mrf.mxu0
        %v768 = vadd.f32 0.0, %v767
        %v769 = vpop.f32.mrf.mxu0
        %770 = vmatprep.mubr.f32.mxu0 %v637
        %771 = vmatmul.mubr.f32.gmra.mxu0 %v636
        %v772 = vpop.f32.mrf.mxu0
        %v773 = vadd.f32 0.0, %v772
        %v774 = vpop.f32.mrf.mxu0
        %775 = vmatprep.mubr.f32.mxu0 %v639
        %776 = vmatmul.mubr.f32.gmra.mxu0 %v638
        %v777 = vpop.f32.mrf.mxu0
        %v778 = vadd.f32 0.0, %v777
        %v779 = vpop.f32.mrf.mxu0
        %780 = vmatprep.mubr.f32.mxu0 %v641
        %781 = vmatmul.mubr.f32.gmra.mxu0 %v640
        %v782 = vpop.f32.mrf.mxu0
        %v783 = vadd.f32 0.0, %v782
        %v784 = vpop.f32.mrf.mxu0
        %785 = vmatprep.mubr.f32.mxu0 %v643
        %786 = vmatmul.mubr.f32.gmra.mxu0 %v642
        %v787 = vpop.f32.mrf.mxu0
        %v788 = vadd.f32 0.0, %v787
        %v789 = vpop.f32.mrf.mxu0
        %790 = vmatprep.mubr.f32.mxu0 %v645
        %791 = vmatmul.mubr.f32.gmra.mxu0 %v644
        %v792 = vpop.f32.mrf.mxu0
        %v793 = vadd.f32 0.0, %v792
        %v794 = vpop.f32.mrf.mxu0
        %795 = vmatprep.mubr.f32.mxu0 %v647
        %796 = vmatmul.mubr.f32.gmra.mxu0 %v646
        %v797 = vpop.f32.mrf.mxu0
        %v798 = vadd.f32 0.0, %v797
        %v799 = vpop.f32.mrf.mxu0
        %800 = vmatprep.mubr.f32.mxu0 %v649
        %801 = vmatmul.mubr.f32.gmra.mxu0 %v648
        %v802 = vpop.f32.mrf.mxu0
        %v803 = vadd.f32 0.0, %v802
        %v804 = vpop.f32.mrf.mxu0
        %805 = vmatprep.mubr.f32.mxu0 %v651
        %806 = vmatmul.mubr.f32.gmra.mxu0 %v650
        %v807 = vpop.f32.mrf.mxu0
        %v808 = vadd.f32 0.0, %v807
        %v809 = vpop.f32.mrf.mxu0
        %810 = vmatprep.mubr.f32.mxu0 %v653
        %811 = vmatmul.mubr.f32.gmra.mxu0 %v652
        %v812 = vpop.f32.mrf.mxu0
        %v813 = vadd.f32 0.0, %v812
        %v814 = vpop.f32.mrf.mxu0
        %815 = vmatprep.mubr.f32.mxu0 %v655
        %816 = vmatmul.mubr.f32.gmra.mxu0 %v654
        %v817 = vpop.f32.mrf.mxu0
        %v818 = vadd.f32 0.0, %v817
        %v819 = vpop.f32.mrf.mxu0
        %820 = vmatprep.mubr.f32.mxu0 %v657
        %821 = vmatmul.mubr.f32.gmra.mxu0 %v656
        %v822 = vpop.f32.mrf.mxu0
        %v823 = vadd.f32 0.0, %v822
        %v824 = vpop.f32.mrf.mxu0
        %825 = vmatprep.mubr.f32.mxu0 %v659
        %826 = vmatmul.mubr.f32.gmra.mxu0 %v658
        %v827 = vpop.f32.mrf.mxu0
        %v828 = vadd.f32 0.0, %v827
        %v829 = vpop.f32.mrf.mxu0
        %830 = vmatprep.mubr.f32.mxu0 %v661
        %831 = vmatmul.mubr.f32.gmra.mxu0 %v660
        %v832 = vpop.f32.mrf.mxu0
        %v833 = vadd.f32 0.0, %v832
        %v834 = vpop.f32.mrf.mxu0
        %835 = vmatprep.mubr.f32.mxu0 %v663
        %836 = vmatmul.mubr.f32.gmra.mxu0 %v662
        %v837 = vpop.f32.mrf.mxu0
        %v838 = vadd.f32 0.0, %v837
        %v839 = vpop.f32.mrf.mxu0
        %840 = vmatprep.mubr.f32.mxu0 %v665
        %841 = vmatmul.mubr.f32.gmra.mxu0 %v664
        %v842 = vpop.f32.mrf.mxu0
        %v843 = vadd.f32 0.0, %v842
        %v844 = vpop.f32.mrf.mxu0
        %845 = vmatprep.mubr.f32.mxu0 %v667
        %846 = vmatmul.mubr.f32.gmra.mxu0 %v666
        %v847 = vpop.f32.mrf.mxu0
        %v848 = vadd.f32 0.0, %v847
        %v849 = vpop.f32.mrf.mxu0
        %850 = vmatprep.mubr.f32.mxu0 %v669
        %851 = vmatmul.mubr.f32.gmra.mxu0 %v668
        %v852 = vpop.f32.mrf.mxu0
        %v853 = vadd.f32 0.0, %v852
        %v854 = vpop.f32.mrf.mxu0
        %855 = vmatprep.mubr.f32.mxu0 %v671
        %856 = vmatmul.mubr.f32.gmra.mxu0 %v670
        %v857 = vpop.f32.mrf.mxu0
        %v858 = vadd.f32 0.0, %v857
        %v859 = vpop.f32.mrf.mxu0
        %860 = vmatprep.mubr.f32.mxu0 %v673
        %861 = vmatmul.mubr.f32.gmra.mxu0 %v672
        %v862 = vpop.f32.mrf.mxu0
        %v863 = vadd.f32 0.0, %v862
        %v864 = vpop.f32.mrf.mxu0
        %865 = vmatprep.mubr.f32.mxu0 %v675
        %866 = vmatmul.mubr.f32.gmra.mxu0 %v674
        %v867 = vpop.f32.mrf.mxu0
        %v868 = vadd.f32 0.0, %v867
        %v869 = vpop.f32.mrf.mxu0
        %870 = vmatprep.mubr.f32.mxu0 %v677
        %871 = vmatmul.mubr.f32.gmra.mxu0 %v676
        %v872 = vpop.f32.mrf.mxu0
        %v873 = vadd.f32 0.0, %v872
        %v874 = vpop.f32.mrf.mxu0
        %875 = vmatprep.mubr.f32.mxu0 %v679
        %876 = vmatmul.mubr.f32.gmra.mxu0 %v678
        %v877 = vpop.f32.mrf.mxu0
        %v878 = vadd.f32 0.0, %v877
        %v879 = vpop.f32.mrf.mxu0
        %880 = vmatprep.mubr.f32.mxu0 %v681
        %881 = vmatmul.mubr.f32.gmra.mxu0 %v680
        %v882 = vpop.f32.mrf.mxu0
        %v883 = vadd.f32 0.0, %v882
        %v884 = vpop.f32.mrf.mxu0
        %885 = vmatprep.mubr.f32.mxu0 %v683
        %886 = vmatmul.mubr.f32.gmra.mxu0 %v682
        %v887 = vpop.f32.mrf.mxu0
        %v888 = vadd.f32 0.0, %v887
        %v889 = vpop.f32.mrf.mxu0
        %890 = vmatprep.mubr.f32.mxu0 %v685
        %891 = vmatmul.mubr.f32.gmra.mxu0 %v684
        %v892 = vpop.f32.mrf.mxu0
        %v893 = vadd.f32 0.0, %v892
        %v894 = vpop.f32.mrf.mxu0
        %895 = vmatprep.mubr.f32.mxu0 %v687
        %896 = vmatmul.mubr.f32.gmra.mxu0 %v686
        %v897 = vpop.f32.mrf.mxu0
        %v898 = vadd.f32 0.0, %v897
        %v899 = vpop.f32.mrf.mxu0
        %900 = vmatprep.mubr.f32.mxu0 %v689
        %901 = vmatmul.mubr.f32.gmra.mxu0 %v688
        %v902 = vpop.f32.mrf.mxu0
        %v903 = vadd.f32 0.0, %v902
        %v904 = vpop.f32.mrf.mxu0
        %905 = vmatprep.mubr.f32.mxu0 %v691
        %906 = vmatmul.mubr.f32.gmra.mxu0 %v690
        %v907 = vpop.f32.mrf.mxu0
        %v908 = vadd.f32 0.0, %v907
        %v909 = vpop.f32.mrf.mxu0
        %910 = vmatprep.mubr.f32.mxu0 %v693
        %911 = vmatmul.mubr.f32.gmra.mxu0 %v692
        %v912 = vpop.f32.mrf.mxu0
        %v913 = vadd.f32 0.0, %v912
        %v914 = vpop.f32.mrf.mxu0
        %915 = vmatprep.mubr.f32.mxu0 %v695
        %916 = vmatmul.mubr.f32.gmra.mxu0 %v694
        %v917 = vpop.f32.mrf.mxu0
        %v918 = vadd.f32 0.0, %v917
        %v919 = vpop.f32.mrf.mxu0
        %920 = vdwg.mxu0
        %v921 = vadd.f32 %v600, %v763
        %v922 = vadd.f32 %v601, %v768
        %v923 = vadd.f32 %v602, %v773
        %v924 = vadd.f32 %v603, %v778
        %v925 = vadd.f32 %v604, %v783
        %v926 = vadd.f32 %v605, %v788
        %v927 = vadd.f32 %v606, %v793
        %v928 = vadd.f32 %v607, %v798
        %v929 = vadd.f32 %v608, %v803
        %v930 = vadd.f32 %v609, %v808
        %v931 = vadd.f32 %v610, %v813
        %v932 = vadd.f32 %v611, %v818
        %v933 = vadd.f32 %v612, %v823
        %v934 = vadd.f32 %v613, %v828
        %v935 = vadd.f32 %v614, %v833
        %v936 = vadd.f32 %v615, %v838
        %v937 = vadd.f32 %v616, %v843
        %v938 = vadd.f32 %v617, %v848
        %v939 = vadd.f32 %v618, %v853
        %v940 = vadd.f32 %v619, %v858
        %v941 = vadd.f32 %v620, %v863
        %v942 = vadd.f32 %v621, %v868
        %v943 = vadd.f32 %v622, %v873
        %v944 = vadd.f32 %v623, %v878
        %v945 = vadd.f32 %v624, %v883
        %v946 = vadd.f32 %v625, %v888
        %v947 = vadd.f32 %v626, %v893
        %v948 = vadd.f32 %v627, %v898
        %v949 = vadd.f32 %v628, %v903
        %v950 = vadd.f32 %v629, %v908
        %v951 = vadd.f32 %v630, %v913
        %v952 = vadd.f32 %v631, %v918
        %953 = vst [vmem:[#allocation2] sm:$0xff] %v921
        %954 = vst [vmem:[#allocation2 + $0x8] sm:$0xff] %v922
        %955 = vst [vmem:[#allocation2 + $0x10] sm:$0xff] %v923
        %956 = vst [vmem:[#allocation2 + $0x18] sm:$0xff] %v924
        %957 = vst [vmem:[#allocation2 + $0x20] sm:$0xff] %v925
        %958 = vst [vmem:[#allocation2 + $0x28] sm:$0xff] %v926
        %959 = vst [vmem:[#allocation2 + $0x30] sm:$0xff] %v927
        %960 = vst [vmem:[#allocation2 + $0x38] sm:$0xff] %v928
        %961 = vst [vmem:[#allocation2 + $0x40] sm:$0xff] %v929
        %962 = vst [vmem:[#allocation2 + $0x48] sm:$0xff] %v930
        %963 = vst [vmem:[#allocation2 + $0x50] sm:$0xff] %v931
        %964 = vst [vmem:[#allocation2 + $0x58] sm:$0xff] %v932
        %965 = vst [vmem:[#allocation2 + $0x60] sm:$0xff] %v933
        %966 = vst [vmem:[#allocation2 + $0x68] sm:$0xff] %v934
        %967 = vst [vmem:[#allocation2 + $0x70] sm:$0xff] %v935
        %968 = vst [vmem:[#allocation2 + $0x78] sm:$0xff] %v936
        %969 = vst [vmem:[#allocation2 + $0x80] sm:$0xff] %v937
        %970 = vst [vmem:[#allocation2 + $0x88] sm:$0xff] %v938
        %971 = vst [vmem:[#allocation2 + $0x90] sm:$0xff] %v939
        %972 = vst [vmem:[#allocation2 + $0x98] sm:$0xff] %v940
        %973 = vst [vmem:[#allocation2 + $0xa0] sm:$0xff] %v941
        %974 = vst [vmem:[#allocation2 + $0xa8] sm:$0xff] %v942
        %975 = vst [vmem:[#allocation2 + $0xb0] sm:$0xff] %v943
        %976 = vst [vmem:[#allocation2 + $0xb8] sm:$0xff] %v944
        %977 = vst [vmem:[#allocation2 + $0xc0] sm:$0xff] %v945
        %978 = vst [vmem:[#allocation2 + $0xc8] sm:$0xff] %v946
        %979 = vst [vmem:[#allocation2 + $0xd0] sm:$0xff] %v947
        %980 = vst [vmem:[#allocation2 + $0xd8] sm:$0xff] %v948
        %981 = vst [vmem:[#allocation2 + $0xe0] sm:$0xff] %v949
        %982 = vst [vmem:[#allocation2 + $0xe8] sm:$0xff] %v950
        %983 = vst [vmem:[#allocation2 + $0xf0] sm:$0xff] %v951
        %984 = vst [vmem:[#allocation2 + $0xf8] sm:$0xff] %v952
        %p985 = scmp.eq.s32.totalorder %s29, 1
        // Predicated region
        $region53: #{tpu_custom_call.1} parent=35 // pred_check
          %p986 = pneg %p985
        $region54: #{tpu_custom_call.1} parent=35 // pred_check_branch
          %988 = sbr.rel (%p986) target = $region56
        $region55: #{tpu_custom_call.1} parent=35 // pred_region
          %v989 = vld [vmem:[#allocation2] sm:$0xff]
          %v990 = vld [vmem:[#allocation2 + $0x8] sm:$0xff]
          %v991 = vld [vmem:[#allocation2 + $0x10] sm:$0xff]
          %v992 = vld [vmem:[#allocation2 + $0x18] sm:$0xff]
          %v993 = vld [vmem:[#allocation2 + $0x20] sm:$0xff]
          %v994 = vld [vmem:[#allocation2 + $0x28] sm:$0xff]
          %v995 = vld [vmem:[#allocation2 + $0x30] sm:$0xff]
          %v996 = vld [vmem:[#allocation2 + $0x38] sm:$0xff]
          %v997 = vld [vmem:[#allocation2 + $0x40] sm:$0xff]
          %v998 = vld [vmem:[#allocation2 + $0x48] sm:$0xff]
          %v999 = vld [vmem:[#allocation2 + $0x50] sm:$0xff]
          %v1000 = vld [vmem:[#allocation2 + $0x58] sm:$0xff]
          %v1001 = vld [vmem:[#allocation2 + $0x60] sm:$0xff]
          %v1002 = vld [vmem:[#allocation2 + $0x68] sm:$0xff]
          %v1003 = vld [vmem:[#allocation2 + $0x70] sm:$0xff]
          %v1004 = vld [vmem:[#allocation2 + $0x78] sm:$0xff]
          %v1005 = vld [vmem:[#allocation2 + $0x80] sm:$0xff]
          %v1006 = vld [vmem:[#allocation2 + $0x88] sm:$0xff]
          %v1007 = vld [vmem:[#allocation2 + $0x90] sm:$0xff]
          %v1008 = vld [vmem:[#allocation2 + $0x98] sm:$0xff]
          %v1009 = vld [vmem:[#allocation2 + $0xa0] sm:$0xff]
          %v1010 = vld [vmem:[#allocation2 + $0xa8] sm:$0xff]
          %v1011 = vld [vmem:[#allocation2 + $0xb0] sm:$0xff]
          %v1012 = vld [vmem:[#allocation2 + $0xb8] sm:$0xff]
          %v1013 = vld [vmem:[#allocation2 + $0xc0] sm:$0xff]
          %v1014 = vld [vmem:[#allocation2 + $0xc8] sm:$0xff]
          %v1015 = vld [vmem:[#allocation2 + $0xd0] sm:$0xff]
          %v1016 = vld [vmem:[#allocation2 + $0xd8] sm:$0xff]
          %v1017 = vld [vmem:[#allocation2 + $0xe0] sm:$0xff]
          %v1018 = vld [vmem:[#allocation2 + $0xe8] sm:$0xff]
          %v1019 = vld [vmem:[#allocation2 + $0xf0] sm:$0xff]
          %v1020 = vld [vmem:[#allocation2 + $0xf8] sm:$0xff]
          %v1021 = vld [vmem:[%s3] sm:$0x1]
          %v1023 = vlaneseq
          %v1024 = vshrl.u32 %v1023, 7
          %v1025 = vsub.s32 0, %v1024
          %v1026 = vrot.slane %v1021, %v1025
          %v1028 = vadd.f32 %v989, %v1026
          %v1029 = vadd.f32 %v990, %v1026
          %v1030 = vadd.f32 %v991, %v1026
          %v1031 = vadd.f32 %v992, %v1026
          %v1032 = vadd.f32 %v993, %v1026
          %v1033 = vadd.f32 %v994, %v1026
          %v1034 = vadd.f32 %v995, %v1026
          %v1035 = vadd.f32 %v996, %v1026
          %v1036 = vadd.f32 %v997, %v1026
          %v1037 = vadd.f32 %v998, %v1026
          %v1038 = vadd.f32 %v999, %v1026
          %v1039 = vadd.f32 %v1000, %v1026
          %v1040 = vadd.f32 %v1001, %v1026
          %v1041 = vadd.f32 %v1002, %v1026
          %v1042 = vadd.f32 %v1003, %v1026
          %v1043 = vadd.f32 %v1004, %v1026
          %v1044 = vadd.f32 %v1005, %v1026
          %v1045 = vadd.f32 %v1006, %v1026
          %v1046 = vadd.f32 %v1007, %v1026
          %v1047 = vadd.f32 %v1008, %v1026
          %v1048 = vadd.f32 %v1009, %v1026
          %v1049 = vadd.f32 %v1010, %v1026
          %v1050 = vadd.f32 %v1011, %v1026
          %v1051 = vadd.f32 %v1012, %v1026
          %v1052 = vadd.f32 %v1013, %v1026
          %v1053 = vadd.f32 %v1014, %v1026
          %v1054 = vadd.f32 %v1015, %v1026
          %v1055 = vadd.f32 %v1016, %v1026
          %v1056 = vadd.f32 %v1017, %v1026
          %v1057 = vadd.f32 %v1018, %v1026
          %v1058 = vadd.f32 %v1019, %v1026
          %v1059 = vadd.f32 %v1020, %v1026
          %1060 = vst [vmem:[%s286] sm:$0xff] %v1028
          %1061 = vst [vmem:[%s286 + $0x8] sm:$0xff] %v1029
          %1062 = vst [vmem:[%s286 + $0x10] sm:$0xff] %v1030
          %1063 = vst [vmem:[%s286 + $0x18] sm:$0xff] %v1031
          %1064 = vst [vmem:[%s286 + $0x20] sm:$0xff] %v1032
          %1065 = vst [vmem:[%s286 + $0x28] sm:$0xff] %v1033
          %1066 = vst [vmem:[%s286 + $0x30] sm:$0xff] %v1034
          %1067 = vst [vmem:[%s286 + $0x38] sm:$0xff] %v1035
          %1068 = vst [vmem:[%s286 + $0x40] sm:$0xff] %v1036
          %1069 = vst [vmem:[%s286 + $0x48] sm:$0xff] %v1037
          %1070 = vst [vmem:[%s286 + $0x50] sm:$0xff] %v1038
          %1071 = vst [vmem:[%s286 + $0x58] sm:$0xff] %v1039
          %1072 = vst [vmem:[%s286 + $0x60] sm:$0xff] %v1040
          %1073 = vst [vmem:[%s286 + $0x68] sm:$0xff] %v1041
          %1074 = vst [vmem:[%s286 + $0x70] sm:$0xff] %v1042
          %1075 = vst [vmem:[%s286 + $0x78] sm:$0xff] %v1043
          %1076 = vst [vmem:[%s286 + $0x80] sm:$0xff] %v1044
          %1077 = vst [vmem:[%s286 + $0x88] sm:$0xff] %v1045
          %1078 = vst [vmem:[%s286 + $0x90] sm:$0xff] %v1046
          %1079 = vst [vmem:[%s286 + $0x98] sm:$0xff] %v1047
          %1080 = vst [vmem:[%s286 + $0xa0] sm:$0xff] %v1048
          %1081 = vst [vmem:[%s286 + $0xa8] sm:$0xff] %v1049
          %1082 = vst [vmem:[%s286 + $0xb0] sm:$0xff] %v1050
          %1083 = vst [vmem:[%s286 + $0xb8] sm:$0xff] %v1051
          %1084 = vst [vmem:[%s286 + $0xc0] sm:$0xff] %v1052
          %1085 = vst [vmem:[%s286 + $0xc8] sm:$0xff] %v1053
          %1086 = vst [vmem:[%s286 + $0xd0] sm:$0xff] %v1054
          %1087 = vst [vmem:[%s286 + $0xd8] sm:$0xff] %v1055
          %1088 = vst [vmem:[%s286 + $0xe0] sm:$0xff] %v1056
          %1089 = vst [vmem:[%s286 + $0xe8] sm:$0xff] %v1057
          %1090 = vst [vmem:[%s286 + $0xf0] sm:$0xff] %v1058
          %1091 = vst [vmem:[%s286 + $0xf8] sm:$0xff] %v1059
        $region56: #{tpu_custom_call.1} parent=35 // pred_fallthru
          _
        %s1092 = sand.u32 %s140, 1
        %s1093 = scalar_lea.sflag [#allocation5], %s1092
        %s1094 = sand.u32 %s140, 1
        %s1095 = smul.addr %s1094, 256
        %s1096 = scalar_lea.vmem [#allocation9], %s1095
        // Predicated region
        $region57: #{tpu_custom_call.1} parent=35 // pred_check
          %p1097 = pneg %p150
        $region58: #{tpu_custom_call.1} parent=35 // pred_check_branch
          %1099 = sbr.rel (%p1097) target = $region60
        $region59: #{tpu_custom_call.1} parent=35 // pred_region
          %s1100 = smul.u32 32, %s28
          %s1102 = ssub.s32 4096, 4096
          %1103 = vsyncadd %s1093, %s1102
          %s1104 = smul.addr %s1100, 128
          %s1105 = scalar_lea.hbm %s4, %s1104
          %s1106 = sshll.u32 %s1096, 4
          %s1107 = int_to_ptr.vmem [resolvable:$true] %s1106
          %1112 = dma.vmem_to_hbm [thread:$0]  %s1107, 4096, %s1105, %s1093, 128, 128, 8
        $region60: #{tpu_custom_call.1} parent=35 // pred_fallthru
          _
      $region36: #{tpu_custom_call.1} parent=5 // pred_fallthru
        _
      %p1113 = scmp.le.s32.totalorder 2, %s19
      // Predicated region
      $region61: #{tpu_custom_call.1} parent=5 // pred_check
        %p1114 = pneg %p1113
      $region62: #{tpu_custom_call.1} parent=5 // pred_check_branch
        %1116 = sbr.rel (%p1114) target = $region64
      $region63: #{tpu_custom_call.1} parent=5 // pred_region
        %s1117 = ssub.s32 %s19, 2
        // Predicated region
        $region65: #{tpu_custom_call.1} parent=63 // pred_check
          %p1118 = pneg %p156
        $region66: #{tpu_custom_call.1} parent=63 // pred_check_branch
          %1120 = sbr.rel (%p1118) target = $region68
        $region67: #{tpu_custom_call.1} parent=63 // pred_region
          %s1121 = sand.u32 %s141, 1
          %s1122 = scalar_lea.sflag [#allocation5], %s1121
          %s1123 = sand.u32 %s141, 1
          %s1124 = smul.addr %s1123, 256
          %s1125 = scalar_lea.vmem [#allocation9], %s1124
          %1126 = dma.done %s1122, 4096
        $region68: #{tpu_custom_call.1} parent=63 // pred_fallthru
          _
      $region64: #{tpu_custom_call.1} parent=5 // pred_fallthru
        _
    $region6: #{tpu_custom_call.1} parent=1 // loop_footer
      %s23 = sadd.s32 1, %s19
    $region7: #{tpu_custom_call.1} parent=1 // loop_footer_branch
      %18 = sbr.rel target = $region3
    $region8: #{tpu_custom_call.1} parent=1 // loop_exit
      _
    %1127 = vsyncpa [#allocation4], 1
    %s1128 = scalar_lea.sflag [#allocation4], 1
    %1129 = vsyncpa %s1128, 1
    %1130 = vsyncpa [#allocation7], 1
    %s1131 = scalar_lea.sflag [#allocation7], 1
    %1132 = vsyncpa %s1131, 1
    %1133 = vsyncpa [#allocation5], 1
    %s1134 = scalar_lea.sflag [#allocation5], 1
    %1135 = vsyncpa %s1134, 1

</llo_original>
